<compile_context>
chip_gen: v6e
topology: v6e:2x2x1
jax: 0.10.0
libtpu: 0.0.40
codegen_flags: <defaults>
</compile_context>

<pallas_src>
import jax
import jax.numpy as jnp
from jax import lax
from jax.experimental import pallas as pl
from jax.experimental.pallas import tpu as pltpu

EPS = 1e-12  # matches torch F.normalize default eps


def _round_up(x, m):
    return (x + m - 1) // m * m


def arc_margin_kernel(feat_ref, w_ref, out_ref, wn_ref):
    # Grid = (C_tiles, B_tiles). The weight tile only changes when the outer C
    # index advances, i.e. exactly when the inner B index wraps to 0, so the
    # normalized weight is computed once per C tile and reused across B tiles.
    @pl.when(pl.program_id(1) == 0)
    def _():
        w = w_ref[...].astype(jnp.float32)                      # (Ct, D)
        w_ssq = jnp.sum(w * w, axis=-1, keepdims=True)
        # rsqrt(max(ssq, eps^2)) == 1 / max(||w||, eps)  (torch F.normalize)
        wn_ref[...] = w * lax.rsqrt(jnp.maximum(w_ssq, EPS * EPS))

    f = feat_ref[...].astype(jnp.float32)                        # (Bt, D)
    f_ssq = jnp.sum(f * f, axis=-1, keepdims=True)
    f_n = f * lax.rsqrt(jnp.maximum(f_ssq, EPS * EPS))

    # Contract last (D) dims directly: MXU folds the "transpose" into operand
    # loading, no XLU vxpose and no materialized (D, C) copy.
    cosine = lax.dot_general(
        f_n,
        wn_ref[...],
        dimension_numbers=(((1,), (1,)), ((), ())),
        preferred_element_type=jnp.float32,
    )
    out_ref[...] = cosine.astype(out_ref.dtype)


def arc_margin_product(features, weight, *, b_tile=128, c_tile=512):
    """cosine = normalize(features) @ normalize(weight).T via a C/B-tiled Pallas kernel."""
    B, D = features.shape
    C, D2 = weight.shape
    assert D == D2, "feature dim mismatch"

    # Tile sizes: sublane-aligned B tile, lane-dense (multiple-of-128) C tile.
    bt = min(b_tile, _round_up(B, 8))
    ct = min(c_tile, _round_up(C, 128))
    Bp = _round_up(B, bt)
    Cp = _round_up(C, ct)

    f = features if Bp == B else jnp.pad(features, ((0, Bp - B), (0, 0)))
    w = weight if Cp == C else jnp.pad(weight, ((0, Cp - C), (0, 0)))

    grid = (Cp // ct, Bp // bt)  # C outer (parallel), B inner -> weight tile resident

    # VMEM budget: double-buffered feat/weight/out tiles + the wn scratch, with
    # headroom, capped below v7x's 64 MiB physical VMEM.
    vmem_bytes = 4 * (2 * bt * D + 3 * ct * D + 2 * bt * ct)
    vmem_limit = int(min(48 * 1024 * 1024, max(4 * vmem_bytes, 16 * 1024 * 1024)))

    out = pl.pallas_call(
        arc_margin_kernel,
        out_shape=jax.ShapeDtypeStruct((Bp, Cp), features.dtype),
        grid_spec=pltpu.PrefetchScalarGridSpec(
            num_scalar_prefetch=0,
            grid=grid,
            in_specs=[
                pl.BlockSpec((bt, D), lambda c, b: (b, 0)),   # features: varies with B only
                pl.BlockSpec((ct, D), lambda c, b: (c, 0)),   # weight: varies with C only
            ],
            out_specs=pl.BlockSpec((bt, ct), lambda c, b: (b, c)),
            scratch_shapes=[pltpu.VMEM((ct, D), jnp.float32)],  # cached normalized weight
        ),
        compiler_params=pltpu.CompilerParams(
            dimension_semantics=("parallel", "arbitrary"),
            vmem_limit_bytes=vmem_limit,
        ),
        cost_estimate=pl.CostEstimate(
            flops=2 * B * C * D,
            transcendentals=B + C,
            bytes_accessed=4 * (B * D + C * D + B * C),
        ),
    )(f, w)

    if Bp != B or Cp != C:
        out = out[:B, :C]
    return out


def xavier_uniform(key, out_features, in_features, dtype=jnp.float32):
    # nn.init.xavier_uniform_ on a (out, in) matrix: U(-a, a), a = sqrt(6/(fan_in+fan_out))
    bound = (6.0 / (in_features + out_features)) ** 0.5
    return jax.random.uniform(
        key, (out_features, in_features), dtype=dtype, minval=-bound, maxval=bound
    )


if __name__ == "__main__":
    # Small but TPU-friendly shapes; tiles chosen so the grid is (2, 2) and the
    # weight-resident / once-per-C-tile normalization path is exercised.
    in_features = 128
    out_features = 512
    batch = 32

    key = jax.random.PRNGKey(0)
    k_w, k_x = jax.random.split(key)

    weight = xavier_uniform(k_w, out_features, in_features)
    features = jax.random.normal(k_x, (batch, in_features), dtype=jnp.float32)

    cosine = arc_margin_product(features, weight, b_tile=16, c_tile=256)
    cosine = jax.block_until_ready(cosine)

    # Reference check in plain JAX.
    f_n = features / jnp.maximum(jnp.linalg.norm(features, axis=1, keepdims=True), EPS)
    w_n = weight / jnp.maximum(jnp.linalg.norm(weight, axis=1, keepdims=True), EPS)
    ref = f_n @ w_n.T
    assert cosine.shape == (batch, out_features)
    assert jnp.allclose(cosine, ref, atol=1e-4), "mismatch vs reference"

    print("KERNEL_OK")
</pallas_src>

<mosaic_0001>
module attributes {stable_mosaic.version = 11 : i64} {
  func.func @arc_margin_kernel(%arg0: i32, %arg1: i32, %arg2: memref<16x128xf32, #tpu.memory_space<vmem>>, %arg3: memref<256x128xf32, #tpu.memory_space<vmem>>, %arg4: memref<16x256xf32, #tpu.memory_space<vmem>>, %arg5: memref<256x128xf32, #tpu.memory_space<vmem>>) attributes {dimension_semantics = [#tpu.dimension_semantics<parallel>, #tpu.dimension_semantics<arbitrary>], iteration_bounds = array<i64: 2, 2>, scalar_prefetch = 0 : i64, scratch_operands = 1 : i64, tpu.core_type = #tpu.core_type<tc>, window_params = [{transform_indices = @transform_0, window_bounds = array<i64: 16, 128>}, {transform_indices = @transform_1, window_bounds = array<i64: 256, 128>}, {transform_indices = @transform_2, window_bounds = array<i64: 16, 256>}]} {
    %c0_i32 = arith.constant 0 : i32
    %0 = arith.cmpi eq, %arg1, %c0_i32 : i32
    %1 = arith.extui %0 : i1 to i32
    %c0_i32_0 = arith.constant 0 : i32
    %2 = arith.cmpi ne, %1, %c0_i32_0 : i32
    scf.if %2 {
      %c0_8 = arith.constant 0 : index
      %c0_9 = arith.constant 0 : index
      %15 = vector.load %arg3[%c0_8, %c0_9] : memref<256x128xf32, #tpu.memory_space<vmem>>, vector<256x128xf32>
      %16 = arith.mulf %15, %15 : vector<256x128xf32>
      %cst_10 = arith.constant dense<0.000000e+00> : vector<256xf32>
      %17 = vector.multi_reduction <add>, %16, %cst_10 [1] : vector<256x128xf32> to vector<256xf32>
      %18 = vector.shape_cast %17 : vector<256xf32> to vector<256x1xf32>
      %cst_11 = arith.constant 1.000000e-24 : f32
      %19 = vector.broadcast %cst_11 : f32 to vector<256x1xf32>
      %20 = arith.maximumf %18, %19 : vector<256x1xf32>
      %21 = math.rsqrt %20 : vector<256x1xf32>
      %22 = vector.broadcast %21 : vector<256x1xf32> to vector<256x128xf32>
      %23 = arith.mulf %15, %22 : vector<256x128xf32>
      %c0_12 = arith.constant 0 : index
      %c0_13 = arith.constant 0 : index
      %24 = vector.load %arg5[%c0_12, %c0_13] : memref<256x128xf32, #tpu.memory_space<vmem>>, vector<256x128xf32>
      tpu.vector_store %arg5[%c0_12, %c0_13], %23 {strides = array<i32>} : memref<256x128xf32, #tpu.memory_space<vmem>>, vector<256x128xf32>,
    } else {
    }
    %c0 = arith.constant 0 : index
    %c0_1 = arith.constant 0 : index
    %3 = vector.load %arg2[%c0, %c0_1] : memref<16x128xf32, #tpu.memory_space<vmem>>, vector<16x128xf32>
    %4 = arith.mulf %3, %3 : vector<16x128xf32>
    %cst = arith.constant dense<0.000000e+00> : vector<16xf32>
    %5 = vector.multi_reduction <add>, %4, %cst [1] : vector<16x128xf32> to vector<16xf32>
    %6 = vector.shape_cast %5 : vector<16xf32> to vector<16x1xf32>
    %cst_2 = arith.constant 1.000000e-24 : f32
    %7 = vector.broadcast %cst_2 : f32 to vector<16x1xf32>
    %8 = arith.maximumf %6, %7 : vector<16x1xf32>
    %9 = math.rsqrt %8 : vector<16x1xf32>
    %10 = vector.broadcast %9 : vector<16x1xf32> to vector<16x128xf32>
    %11 = arith.mulf %3, %10 : vector<16x128xf32>
    %c0_3 = arith.constant 0 : index
    %c0_4 = arith.constant 0 : index
    %12 = vector.load %arg5[%c0_3, %c0_4] : memref<256x128xf32, #tpu.memory_space<vmem>>, vector<256x128xf32>
    %cst_5 = arith.constant dense<0.000000e+00> : vector<16x256xf32>
    %13 = tpu.matmul %11, %12, %cst_5 {dimension_numbers = #tpu.dot_dimension_numbers<[1], [1], [0], [0], [0, 0, 1, 0], [], []>} : vector<16x128xf32>, vector<256x128xf32>, vector<16x256xf32> -> vector<16x256xf32>
    %c0_6 = arith.constant 0 : index
    %c0_7 = arith.constant 0 : index
    %14 = vector.load %arg4[%c0_6, %c0_7] : memref<16x256xf32, #tpu.memory_space<vmem>>, vector<16x256xf32>
    tpu.vector_store %arg4[%c0_6, %c0_7], %13 {strides = array<i32>} : memref<16x256xf32, #tpu.memory_space<vmem>>, vector<16x256xf32>,
    return
  }
  func.func @transform_0(%arg0: i32, %arg1: i32) -> (i32, i32) {
    %c0_i32 = arith.constant 0 : i32
    %c0_i32_0 = arith.constant 0 : i32
    return %arg1, %c0_i32 : i32, i32
  }
  func.func @transform_1(%arg0: i32, %arg1: i32) -> (i32, i32) {
    %c0_i32 = arith.constant 0 : i32
    %c0_i32_0 = arith.constant 0 : i32
    return %arg0, %c0_i32 : i32, i32
  }
  func.func @transform_2(%arg0: i32, %arg1: i32) -> (i32, i32) {
    %c0_i32 = arith.constant 0 : i32
    return %arg1, %arg0 : i32, i32
  }
}

</mosaic_0001>

<llo_original>
// kernel: tpu_custom_call.1
$region0: #{tpu_custom_call.1}
  #allocation0 [shape = 'u32[]', space=smem, size = 0x4, offset = 0x4, fixed_abs, tag = 'smem constant byte address 0x4 - core index']
  #allocation1 [shape = 'u32[144,128]{1,0:T(1,128)}', space=vmem, size = 0x12000, scoped, tag = 'internal scratch']
  #allocation2 [shape = 'f32[256,128]{1,0:T(8,128)}', space=vmem, size = 0x20000, scoped, tag = 'scratch operand']
  %s0 = inlined_call_operand.hbm [shape: f32[32,128], index: 0, kind: input, shape index: {}]
  %s1 = inlined_call_operand.hbm [shape: f32[512,128], index: 1, kind: input, shape index: {}]
  %s2 = inlined_call_operand.hbm [shape: f32[32,512], index: 2, kind: output, shape index: {}]
  %s3 = sld [smem:[#allocation0]]
  $region53: #{tpu_custom_call.1} parent=0
    _
  %s5 = ssub.s32 1, %s3
  %s6 = scalar_select 0, %s5, %s3
  $region1: #{tpu_custom_call.1} parent=0
    #allocation3 [shape = 'u8[16384]{0}', space=vmem, size = 0x4000, scoped, tag = 'input window, operand 0']
    #allocation4 [shape = 's32[2]{0}', space=sflag, size = 0x8, scoped, tag = 'scoped memory for tpu_custom_call.1']
    #allocation5 [shape = 's32[2]{0}', space=sflag, size = 0x8, scoped, tag = 'scoped memory for tpu_custom_call.1']
    #allocation6 [shape = 'u8[262144]{0}', space=vmem, size = 0x40000, scoped, tag = 'input window, operand 1']
    #allocation7 [shape = 's32[2]{0}', space=sflag, size = 0x8, scoped, tag = 'scoped memory for tpu_custom_call.1']
    #allocation8 [shape = 'u8[32768]{0}', space=vmem, size = 0x8000, scoped, tag = 'output window, operand 0']
    %7 = vsyncpa [#allocation4], 0
    %s8 = scalar_lea.sflag [#allocation4], 1
    %9 = vsyncpa %s8, 0
    %10 = vsyncpa [#allocation7], 0
    %s11 = scalar_lea.sflag [#allocation7], 1
    %12 = vsyncpa %s11, 0
    %13 = vsyncpa [#allocation5], 0
    %s14 = scalar_lea.sflag [#allocation5], 1
    %15 = vsyncpa %s14, 0
    loop: start=0, step=1, limit=6
    $region2: #{tpu_custom_call.1} parent=1 // loop_pre_header
      _
    $region3: #{tpu_custom_call.1} parent=1 // loop_header
      %s17 = sphi 0, %s21
      %p18 = scmp.ge.s32.totalorder %s17, 6
      %s24 = sphi 0, %s36
      %s25 = sphi 0, %s32
      %s26 = sphi 0, %s24
      %s27 = sphi 0, %s25
      %s28 = sphi 0, %s26
      %s29 = sphi 0, %s27
      %s39 = sphi 0, %s41
      %s42 = sphi 0, %s39
      %s43 = sphi 0, %s42
      %s59 = sphi 0, %s43
      %s65 = sphi 0, %s67
      %s68 = sphi 0, %s65
      %s69 = sphi 0, %s68
      %s85 = sphi 0, %s69
      %s93 = sphi 0, %s95
      %s96 = sphi 0, %s93
      %s97 = sphi 0, %s96
      %s113 = sphi 0, %s97
    $region4: #{tpu_custom_call.1} parent=1 // loop_header_branch
      %20 = sbr.rel (%p18) target = $region8
    $region5: #{tpu_custom_call.1} parent=1 // loop_body
      %s22 = ssub.s32 %s17, 1
      %s23 = ssub.s32 %s17, 2
      %s30 = sadd.s32 1, %s25
      %p31 = scmp.ge.s32.totalorder %s30, 2
      %s32 = scalar_select %p31, 0, %s30
      %s33 = sadd.s32 1, %s24
      %s34 = scalar_select %p31, %s33, %s24
      %p35 = scmp.ge.s32.totalorder %s34, 2
      %s36 = scalar_select %p35, 0, %s34
      %s37 = ssub.s32 %s25, %s32
      %p38 = scmp.eq.s32.totalorder %s37, 0
      %s40 = sadd.s32 %s39, 1
      %s41 = scalar_select %p38, %s39, %s40
      %p44 = pneg %p38
      %p45 = scmp.eq.s32.totalorder %s17, 3
      %p46 = por %p44, %p45
      %p47 = scmp.ne.s32.totalorder %s39, %s42
      %p48 = scmp.eq.s32.totalorder %s17, 0
      %p49 = por %p47, %p48
      %p50 = scmp.ne.s32.totalorder %s39, %s42
      %p51 = scmp.eq.s32.totalorder %s22, 3
      %p52 = por %p50, %p51
      %p53 = scmp.ne.s32.totalorder %s42, %s43
      %p54 = scmp.eq.s32.totalorder %s22, 0
      %p55 = por %p53, %p54
      %p56 = scmp.ne.s32.totalorder %s42, %s43
      %p57 = scmp.eq.s32.totalorder %s23, 3
      %p58 = por %p56, %p57
      %p60 = scmp.ne.s32.totalorder %s43, %s59
      %p61 = scmp.eq.s32.totalorder %s23, 0
      %p62 = por %p60, %p61
      %s63 = ssub.s32 %s24, %s36
      %p64 = scmp.eq.s32.totalorder %s63, 0
      %s66 = sadd.s32 %s65, 1
      %s67 = scalar_select %p64, %s65, %s66
      %p70 = pneg %p64
      %p71 = scmp.eq.s32.totalorder %s17, 3
      %p72 = por %p70, %p71
      %p73 = scmp.ne.s32.totalorder %s65, %s68
      %p74 = scmp.eq.s32.totalorder %s17, 0
      %p75 = por %p73, %p74
      %p76 = scmp.ne.s32.totalorder %s65, %s68
      %p77 = scmp.eq.s32.totalorder %s22, 3
      %p78 = por %p76, %p77
      %p79 = scmp.ne.s32.totalorder %s68, %s69
      %p80 = scmp.eq.s32.totalorder %s22, 0
      %p81 = por %p79, %p80
      %p82 = scmp.ne.s32.totalorder %s68, %s69
      %p83 = scmp.eq.s32.totalorder %s23, 3
      %p84 = por %p82, %p83
      %p86 = scmp.ne.s32.totalorder %s69, %s85
      %p87 = scmp.eq.s32.totalorder %s23, 0
      %p88 = por %p86, %p87
      %s89 = ssub.s32 %s25, %s32
      %s90 = ssub.s32 %s24, %s36
      %s91 = sor.u32 %s89, %s90
      %p92 = scmp.eq.s32.totalorder %s91, 0
      %s94 = sadd.s32 %s93, 1
      %s95 = scalar_select %p92, %s93, %s94
      %p98 = pneg %p92
      %p99 = scmp.eq.s32.totalorder %s17, 3
      %p100 = por %p98, %p99
      %p101 = scmp.ne.s32.totalorder %s93, %s96
      %p102 = scmp.eq.s32.totalorder %s17, 0
      %p103 = por %p101, %p102
      %p104 = scmp.ne.s32.totalorder %s93, %s96
      %p105 = scmp.eq.s32.totalorder %s22, 3
      %p106 = por %p104, %p105
      %p107 = scmp.ne.s32.totalorder %s96, %s97
      %p108 = scmp.eq.s32.totalorder %s22, 0
      %p109 = por %p107, %p108
      %p110 = scmp.ne.s32.totalorder %s96, %s97
      %p111 = scmp.eq.s32.totalorder %s23, 3
      %p112 = por %p110, %p111
      %p114 = scmp.ne.s32.totalorder %s97, %s113
      %p115 = scmp.eq.s32.totalorder %s23, 0
      %p116 = por %p114, %p115
      %p117 = scmp.le.s32.totalorder 1, %s17
      %p118 = scmp.lt.s32.totalorder %s17, 5
      %p119 = pnand %p117, %p118
      %p120 = pneg %p119
      // Predicated region
      $region9: #{tpu_custom_call.1} parent=5 // pred_check
        _
      $region10: #{tpu_custom_call.1} parent=5 // pred_check_branch
        %122 = sbr.rel (%p119) target = $region12
      $region11: #{tpu_custom_call.1} parent=5 // pred_region
        %s123 = ssub.s32 %s17, 1
      $region12: #{tpu_custom_call.1} parent=5 // pred_fallthru
        _
      %p124 = scmp.lt.s32.totalorder %s17, 4
      // Predicated region
      $region13: #{tpu_custom_call.1} parent=5 // pred_check
        %p125 = pneg %p124
      $region14: #{tpu_custom_call.1} parent=5 // pred_check_branch
        %127 = sbr.rel (%p125) target = $region16
      $region15: #{tpu_custom_call.1} parent=5 // pred_region
        // Predicated region
        $region17: #{tpu_custom_call.1} parent=15 // pred_check
          %p128 = pneg %p49
        $region18: #{tpu_custom_call.1} parent=15 // pred_check_branch
          %130 = sbr.rel (%p128) target = $region20
        $region19: #{tpu_custom_call.1} parent=15 // pred_region
          %s131 = sand.u32 %s39, 1
          %s132 = scalar_lea.sflag [#allocation4], %s131
          %s133 = sand.u32 %s39, 1
          %s134 = smul.addr %s133, 16
          %s135 = scalar_lea.vmem [#allocation3], %s134
          %s136 = smul.u32 2, %s25
          %s138 = ssub.s32 256, 256
          %139 = vsyncadd %s132, %s138
          %s140 = smul.addr %s136, 128
          %s141 = scalar_lea.hbm %s0, %s140
          %s142 = sshll.u32 %s135, 4
          %s143 = int_to_ptr.vmem [resolvable:$true] %s142
          %148 = dma.hbm_to_vmem [thread:$0]  %s141, 256, %s143, %s132, 128, 128, 8
        $region20: #{tpu_custom_call.1} parent=15 // pred_fallthru
          _
        // Predicated region
        $region21: #{tpu_custom_call.1} parent=15 // pred_check
          %p149 = pneg %p75
        $region22: #{tpu_custom_call.1} parent=15 // pred_check_branch
          %151 = sbr.rel (%p149) target = $region24
        $region23: #{tpu_custom_call.1} parent=15 // pred_region
          %s152 = sand.u32 %s65, 1
          %s153 = scalar_lea.sflag [#allocation7], %s152
          %s154 = sand.u32 %s65, 1
          %s155 = smul.addr %s154, 256
          %s156 = scalar_lea.vmem [#allocation6], %s155
          %s157 = smul.u32 32, %s24
          %s159 = ssub.s32 4096, 4096
          %160 = vsyncadd %s153, %s159
          %s161 = smul.addr %s157, 128
          %s162 = scalar_lea.hbm %s1, %s161
          %s163 = sshll.u32 %s156, 4
          %s164 = int_to_ptr.vmem [resolvable:$true] %s163
          %169 = dma.hbm_to_vmem [thread:$0]  %s162, 4096, %s164, %s153, 128, 128, 8
        $region24: #{tpu_custom_call.1} parent=15 // pred_fallthru
          _
      $region16: #{tpu_custom_call.1} parent=5 // pred_fallthru
        _
      %p170 = scmp.le.s32.totalorder 1, %s17
      %p171 = scmp.lt.s32.totalorder %s17, 5
      %p172 = pnand %p170, %p171
      %p173 = pneg %p172
      // Predicated region
      $region25: #{tpu_custom_call.1} parent=5 // pred_check
        _
      $region26: #{tpu_custom_call.1} parent=5 // pred_check_branch
        %175 = sbr.rel (%p172) target = $region28
      $region27: #{tpu_custom_call.1} parent=5 // pred_region
        %s176 = ssub.s32 %s17, 1
        %s177 = sand.u32 %s42, 1
        %s178 = scalar_lea.sflag [#allocation4], %s177
        %s179 = sand.u32 %s42, 1
        %s180 = smul.addr %s179, 16
        %s181 = scalar_lea.vmem [#allocation3], %s180
        // Predicated region
        $region29: #{tpu_custom_call.1} parent=27 // pred_check
          %p182 = pneg %p55
        $region30: #{tpu_custom_call.1} parent=27 // pred_check_branch
          %184 = sbr.rel (%p182) target = $region32
        $region31: #{tpu_custom_call.1} parent=27 // pred_region
          %185 = dma.done %s178, 256
        $region32: #{tpu_custom_call.1} parent=27 // pred_fallthru
          _
        %s186 = sand.u32 %s68, 1
        %s187 = scalar_lea.sflag [#allocation7], %s186
        %s188 = sand.u32 %s68, 1
        %s189 = smul.addr %s188, 256
        %s190 = scalar_lea.vmem [#allocation6], %s189
        // Predicated region
        $region33: #{tpu_custom_call.1} parent=27 // pred_check
          %p191 = pneg %p81
        $region34: #{tpu_custom_call.1} parent=27 // pred_check_branch
          %193 = sbr.rel (%p191) target = $region36
        $region35: #{tpu_custom_call.1} parent=27 // pred_region
          %194 = dma.done %s187, 4096
        $region36: #{tpu_custom_call.1} parent=27 // pred_fallthru
          _
        %s195 = sand.u32 %s42, 1
        %s196 = scalar_lea.sflag [#allocation4], %s195
        %s197 = sand.u32 %s42, 1
        %s198 = smul.addr %s197, 16
        %s199 = scalar_lea.vmem [#allocation3], %s198
        %p200 = pneg %p55
        %p201 = pneg %p52
        %s202 = sand.u32 %s68, 1
        %s203 = scalar_lea.sflag [#allocation7], %s202
        %s204 = sand.u32 %s68, 1
        %s205 = smul.addr %s204, 256
        %s206 = scalar_lea.vmem [#allocation6], %s205
        %p207 = pneg %p81
        %p208 = pneg %p78
        %p209 = pneg %p109
        %p210 = pneg %p106
        %s211 = sand.u32 %s96, 1
        %s212 = scalar_lea.sflag [#allocation5], %s211
        %s213 = sand.u32 %s96, 1
        %s214 = smul.addr %s213, 32
        %s215 = scalar_lea.vmem [#allocation8], %s214
        %s216 = smul.u32 2, %s27
        %s217 = smul.u32 32, %s26
        %s218 = smul.u32 2, %s27
        %s219 = smul.u32 2, %s26
        %p220 = scmp.eq.s32.totalorder %s27, 0
        // Predicated region
        $region37: #{tpu_custom_call.1} parent=27 // pred_check
          %p221 = pneg %p220
        $region38: #{tpu_custom_call.1} parent=27 // pred_check_branch
          %223 = sbr.rel (%p221) target = $region40
        $region39: #{tpu_custom_call.1} parent=27 // pred_region
          %v224 = vld [vmem:[%s190] sm:$0xff]
          %v225 = vld [vmem:[%s190 + $0x8] sm:$0xff]
          %v226 = vld [vmem:[%s190 + $0x10] sm:$0xff]
          %v227 = vld [vmem:[%s190 + $0x18] sm:$0xff]
          %v228 = vld [vmem:[%s190 + $0x20] sm:$0xff]
          %v229 = vld [vmem:[%s190 + $0x28] sm:$0xff]
          %v230 = vld [vmem:[%s190 + $0x30] sm:$0xff]
          %v231 = vld [vmem:[%s190 + $0x38] sm:$0xff]
          %v232 = vld [vmem:[%s190 + $0x40] sm:$0xff]
          %v233 = vld [vmem:[%s190 + $0x48] sm:$0xff]
          %v234 = vld [vmem:[%s190 + $0x50] sm:$0xff]
          %v235 = vld [vmem:[%s190 + $0x58] sm:$0xff]
          %v236 = vld [vmem:[%s190 + $0x60] sm:$0xff]
          %v237 = vld [vmem:[%s190 + $0x68] sm:$0xff]
          %v238 = vld [vmem:[%s190 + $0x70] sm:$0xff]
          %v239 = vld [vmem:[%s190 + $0x78] sm:$0xff]
          %v240 = vld [vmem:[%s190 + $0x80] sm:$0xff]
          %v241 = vld [vmem:[%s190 + $0x88] sm:$0xff]
          %v242 = vld [vmem:[%s190 + $0x90] sm:$0xff]
          %v243 = vld [vmem:[%s190 + $0x98] sm:$0xff]
          %v244 = vld [vmem:[%s190 + $0xa0] sm:$0xff]
          %v245 = vld [vmem:[%s190 + $0xa8] sm:$0xff]
          %v246 = vld [vmem:[%s190 + $0xb0] sm:$0xff]
          %v247 = vld [vmem:[%s190 + $0xb8] sm:$0xff]
          %v248 = vld [vmem:[%s190 + $0xc0] sm:$0xff]
          %v249 = vld [vmem:[%s190 + $0xc8] sm:$0xff]
          %v250 = vld [vmem:[%s190 + $0xd0] sm:$0xff]
          %v251 = vld [vmem:[%s190 + $0xd8] sm:$0xff]
          %v252 = vld [vmem:[%s190 + $0xe0] sm:$0xff]
          %v253 = vld [vmem:[%s190 + $0xe8] sm:$0xff]
          %v254 = vld [vmem:[%s190 + $0xf0] sm:$0xff]
          %v255 = vld [vmem:[%s190 + $0xf8] sm:$0xff]
          %v256 = vmul.f32 %v224, %v224
          %v257 = vmul.f32 %v225, %v225
          %v258 = vmul.f32 %v226, %v226
          %v259 = vmul.f32 %v227, %v227
          %v260 = vmul.f32 %v228, %v228
          %v261 = vmul.f32 %v229, %v229
          %v262 = vmul.f32 %v230, %v230
          %v263 = vmul.f32 %v231, %v231
          %v264 = vmul.f32 %v232, %v232
          %v265 = vmul.f32 %v233, %v233
          %v266 = vmul.f32 %v234, %v234
          %v267 = vmul.f32 %v235, %v235
          %v268 = vmul.f32 %v236, %v236
          %v269 = vmul.f32 %v237, %v237
          %v270 = vmul.f32 %v238, %v238
          %v271 = vmul.f32 %v239, %v239
          %v272 = vmul.f32 %v240, %v240
          %v273 = vmul.f32 %v241, %v241
          %v274 = vmul.f32 %v242, %v242
          %v275 = vmul.f32 %v243, %v243
          %v276 = vmul.f32 %v244, %v244
          %v277 = vmul.f32 %v245, %v245
          %v278 = vmul.f32 %v246, %v246
          %v279 = vmul.f32 %v247, %v247
          %v280 = vmul.f32 %v248, %v248
          %v281 = vmul.f32 %v249, %v249
          %v282 = vmul.f32 %v250, %v250
          %v283 = vmul.f32 %v251, %v251
          %v284 = vmul.f32 %v252, %v252
          %v285 = vmul.f32 %v253, %v253
          %v286 = vmul.f32 %v254, %v254
          %v287 = vmul.f32 %v255, %v255
          %288 = vadd.xlane.f32.xlu0 %v256
          %v289 = vpop.xlane.xlu0 %288
          %290 = vadd.xlane.f32.xlu0 %v257
          %v291 = vpop.xlane.xlu0 %290
          %292 = vadd.xlane.f32.xlu0 %v258
          %v293 = vpop.xlane.xlu0 %292
          %294 = vadd.xlane.f32.xlu0 %v259
          %v295 = vpop.xlane.xlu0 %294
          %296 = vadd.xlane.f32.xlu0 %v260
          %v297 = vpop.xlane.xlu0 %296
          %298 = vadd.xlane.f32.xlu0 %v261
          %v299 = vpop.xlane.xlu0 %298
          %300 = vadd.xlane.f32.xlu0 %v262
          %v301 = vpop.xlane.xlu0 %300
          %302 = vadd.xlane.f32.xlu0 %v263
          %v303 = vpop.xlane.xlu0 %302
          %304 = vadd.xlane.f32.xlu0 %v264
          %v305 = vpop.xlane.xlu0 %304
          %306 = vadd.xlane.f32.xlu0 %v265
          %v307 = vpop.xlane.xlu0 %306
          %308 = vadd.xlane.f32.xlu0 %v266
          %v309 = vpop.xlane.xlu0 %308
          %310 = vadd.xlane.f32.xlu0 %v267
          %v311 = vpop.xlane.xlu0 %310
          %312 = vadd.xlane.f32.xlu0 %v268
          %v313 = vpop.xlane.xlu0 %312
          %314 = vadd.xlane.f32.xlu0 %v269
          %v315 = vpop.xlane.xlu0 %314
          %316 = vadd.xlane.f32.xlu0 %v270
          %v317 = vpop.xlane.xlu0 %316
          %318 = vadd.xlane.f32.xlu0 %v271
          %v319 = vpop.xlane.xlu0 %318
          %320 = vadd.xlane.f32.xlu0 %v272
          %v321 = vpop.xlane.xlu0 %320
          %322 = vadd.xlane.f32.xlu0 %v273
          %v323 = vpop.xlane.xlu0 %322
          %324 = vadd.xlane.f32.xlu0 %v274
          %v325 = vpop.xlane.xlu0 %324
          %326 = vadd.xlane.f32.xlu0 %v275
          %v327 = vpop.xlane.xlu0 %326
          %328 = vadd.xlane.f32.xlu0 %v276
          %v329 = vpop.xlane.xlu0 %328
          %330 = vadd.xlane.f32.xlu0 %v277
          %v331 = vpop.xlane.xlu0 %330
          %332 = vadd.xlane.f32.xlu0 %v278
          %v333 = vpop.xlane.xlu0 %332
          %334 = vadd.xlane.f32.xlu0 %v279
          %v335 = vpop.xlane.xlu0 %334
          %336 = vadd.xlane.f32.xlu0 %v280
          %v337 = vpop.xlane.xlu0 %336
          %338 = vadd.xlane.f32.xlu0 %v281
          %v339 = vpop.xlane.xlu0 %338
          %340 = vadd.xlane.f32.xlu0 %v282
          %v341 = vpop.xlane.xlu0 %340
          %342 = vadd.xlane.f32.xlu0 %v283
          %v343 = vpop.xlane.xlu0 %342
          %344 = vadd.xlane.f32.xlu0 %v284
          %v345 = vpop.xlane.xlu0 %344
          %346 = vadd.xlane.f32.xlu0 %v285
          %v347 = vpop.xlane.xlu0 %346
          %348 = vadd.xlane.f32.xlu0 %v286
          %v349 = vpop.xlane.xlu0 %348
          %350 = vadd.xlane.f32.xlu0 %v287
          %v351 = vpop.xlane.xlu0 %350
          %v352 = vmax.f32 %v289, 1e-24
          %v353 = vmax.f32 %v291, 1e-24
          %v354 = vmax.f32 %v293, 1e-24
          %v355 = vmax.f32 %v295, 1e-24
          %v356 = vmax.f32 %v297, 1e-24
          %v357 = vmax.f32 %v299, 1e-24
          %v358 = vmax.f32 %v301, 1e-24
          %v359 = vmax.f32 %v303, 1e-24
          %v360 = vmax.f32 %v305, 1e-24
          %v361 = vmax.f32 %v307, 1e-24
          %v362 = vmax.f32 %v309, 1e-24
          %v363 = vmax.f32 %v311, 1e-24
          %v364 = vmax.f32 %v313, 1e-24
          %v365 = vmax.f32 %v315, 1e-24
          %v366 = vmax.f32 %v317, 1e-24
          %v367 = vmax.f32 %v319, 1e-24
          %v368 = vmax.f32 %v321, 1e-24
          %v369 = vmax.f32 %v323, 1e-24
          %v370 = vmax.f32 %v325, 1e-24
          %v371 = vmax.f32 %v327, 1e-24
          %v372 = vmax.f32 %v329, 1e-24
          %v373 = vmax.f32 %v331, 1e-24
          %v374 = vmax.f32 %v333, 1e-24
          %v375 = vmax.f32 %v335, 1e-24
          %v376 = vmax.f32 %v337, 1e-24
          %v377 = vmax.f32 %v339, 1e-24
          %v378 = vmax.f32 %v341, 1e-24
          %v379 = vmax.f32 %v343, 1e-24
          %v380 = vmax.f32 %v345, 1e-24
          %v381 = vmax.f32 %v347, 1e-24
          %v382 = vmax.f32 %v349, 1e-24
          %v383 = vmax.f32 %v351, 1e-24
          %v384 = vrsqrt.pop %v352
          %v385 = vrsqrt.pop %v353
          %v386 = vrsqrt.pop %v354
          %v387 = vrsqrt.pop %v355
          %v388 = vrsqrt.pop %v356
          %v389 = vrsqrt.pop %v357
          %v390 = vrsqrt.pop %v358
          %v391 = vrsqrt.pop %v359
          %v392 = vrsqrt.pop %v360
          %v393 = vrsqrt.pop %v361
          %v394 = vrsqrt.pop %v362
          %v395 = vrsqrt.pop %v363
          %v396 = vrsqrt.pop %v364
          %v397 = vrsqrt.pop %v365
          %v398 = vrsqrt.pop %v366
          %v399 = vrsqrt.pop %v367
          %v400 = vrsqrt.pop %v368
          %v401 = vrsqrt.pop %v369
          %v402 = vrsqrt.pop %v370
          %v403 = vrsqrt.pop %v371
          %v404 = vrsqrt.pop %v372
          %v405 = vrsqrt.pop %v373
          %v406 = vrsqrt.pop %v374
          %v407 = vrsqrt.pop %v375
          %v408 = vrsqrt.pop %v376
          %v409 = vrsqrt.pop %v377
          %v410 = vrsqrt.pop %v378
          %v411 = vrsqrt.pop %v379
          %v412 = vrsqrt.pop %v380
          %v413 = vrsqrt.pop %v381
          %v414 = vrsqrt.pop %v382
          %v415 = vrsqrt.pop %v383
          %v416 = vmul.f32 %v224, %v384
          %v417 = vmul.f32 %v225, %v385
          %v418 = vmul.f32 %v226, %v386
          %v419 = vmul.f32 %v227, %v387
          %v420 = vmul.f32 %v228, %v388
          %v421 = vmul.f32 %v229, %v389
          %v422 = vmul.f32 %v230, %v390
          %v423 = vmul.f32 %v231, %v391
          %v424 = vmul.f32 %v232, %v392
          %v425 = vmul.f32 %v233, %v393
          %v426 = vmul.f32 %v234, %v394
          %v427 = vmul.f32 %v235, %v395
          %v428 = vmul.f32 %v236, %v396
          %v429 = vmul.f32 %v237, %v397
          %v430 = vmul.f32 %v238, %v398
          %v431 = vmul.f32 %v239, %v399
          %v432 = vmul.f32 %v240, %v400
          %v433 = vmul.f32 %v241, %v401
          %v434 = vmul.f32 %v242, %v402
          %v435 = vmul.f32 %v243, %v403
          %v436 = vmul.f32 %v244, %v404
          %v437 = vmul.f32 %v245, %v405
          %v438 = vmul.f32 %v246, %v406
          %v439 = vmul.f32 %v247, %v407
          %v440 = vmul.f32 %v248, %v408
          %v441 = vmul.f32 %v249, %v409
          %v442 = vmul.f32 %v250, %v410
          %v443 = vmul.f32 %v251, %v411
          %v444 = vmul.f32 %v252, %v412
          %v445 = vmul.f32 %v253, %v413
          %v446 = vmul.f32 %v254, %v414
          %v447 = vmul.f32 %v255, %v415
          %448 = vst [vmem:[#allocation2] sm:$0xff] %v416
          %449 = vst [vmem:[#allocation2 + $0x8] sm:$0xff] %v417
          %450 = vst [vmem:[#allocation2 + $0x10] sm:$0xff] %v418
          %451 = vst [vmem:[#allocation2 + $0x18] sm:$0xff] %v419
          %452 = vst [vmem:[#allocation2 + $0x20] sm:$0xff] %v420
          %453 = vst [vmem:[#allocation2 + $0x28] sm:$0xff] %v421
          %454 = vst [vmem:[#allocation2 + $0x30] sm:$0xff] %v422
          %455 = vst [vmem:[#allocation2 + $0x38] sm:$0xff] %v423
          %456 = vst [vmem:[#allocation2 + $0x40] sm:$0xff] %v424
          %457 = vst [vmem:[#allocation2 + $0x48] sm:$0xff] %v425
          %458 = vst [vmem:[#allocation2 + $0x50] sm:$0xff] %v426
          %459 = vst [vmem:[#allocation2 + $0x58] sm:$0xff] %v427
          %460 = vst [vmem:[#allocation2 + $0x60] sm:$0xff] %v428
          %461 = vst [vmem:[#allocation2 + $0x68] sm:$0xff] %v429
          %462 = vst [vmem:[#allocation2 + $0x70] sm:$0xff] %v430
          %463 = vst [vmem:[#allocation2 + $0x78] sm:$0xff] %v431
          %464 = vst [vmem:[#allocation2 + $0x80] sm:$0xff] %v432
          %465 = vst [vmem:[#allocation2 + $0x88] sm:$0xff] %v433
          %466 = vst [vmem:[#allocation2 + $0x90] sm:$0xff] %v434
          %467 = vst [vmem:[#allocation2 + $0x98] sm:$0xff] %v435
          %468 = vst [vmem:[#allocation2 + $0xa0] sm:$0xff] %v436
          %469 = vst [vmem:[#allocation2 + $0xa8] sm:$0xff] %v437
          %470 = vst [vmem:[#allocation2 + $0xb0] sm:$0xff] %v438
          %471 = vst [vmem:[#allocation2 + $0xb8] sm:$0xff] %v439
          %472 = vst [vmem:[#allocation2 + $0xc0] sm:$0xff] %v440
          %473 = vst [vmem:[#allocation2 + $0xc8] sm:$0xff] %v441
          %474 = vst [vmem:[#allocation2 + $0xd0] sm:$0xff] %v442
          %475 = vst [vmem:[#allocation2 + $0xd8] sm:$0xff] %v443
          %476 = vst [vmem:[#allocation2 + $0xe0] sm:$0xff] %v444
          %477 = vst [vmem:[#allocation2 + $0xe8] sm:$0xff] %v445
          %478 = vst [vmem:[#allocation2 + $0xf0] sm:$0xff] %v446
          %479 = vst [vmem:[#allocation2 + $0xf8] sm:$0xff] %v447
        $region40: #{tpu_custom_call.1} parent=27 // pred_fallthru
          _
        %v480 = vld [vmem:[%s181] sm:$0xff]
        %v481 = vld [vmem:[%s181 + $0x8] sm:$0xff]
        %v482 = vmul.f32 %v480, %v480
        %v483 = vmul.f32 %v481, %v481
        %484 = vadd.xlane.f32.xlu0 %v482
        %v485 = vpop.xlane.xlu0 %484
        %486 = vadd.xlane.f32.xlu0 %v483
        %v487 = vpop.xlane.xlu0 %486
        %v488 = vmax.f32 %v485, 1e-24
        %v489 = vmax.f32 %v487, 1e-24
        %v490 = vrsqrt.pop %v488
        %v491 = vrsqrt.pop %v489
        %v492 = vmul.f32 %v480, %v490
        %v493 = vmul.f32 %v481, %v491
        %v494 = vld [vmem:[#allocation2] sm:$0xff]
        %v495 = vld [vmem:[#allocation2 + $0x8] sm:$0xff]
        %v496 = vld [vmem:[#allocation2 + $0x10] sm:$0xff]
        %v497 = vld [vmem:[#allocation2 + $0x18] sm:$0xff]
        %v498 = vld [vmem:[#allocation2 + $0x20] sm:$0xff]
        %v499 = vld [vmem:[#allocation2 + $0x28] sm:$0xff]
        %v500 = vld [vmem:[#allocation2 + $0x30] sm:$0xff]
        %v501 = vld [vmem:[#allocation2 + $0x38] sm:$0xff]
        %v502 = vld [vmem:[#allocation2 + $0x40] sm:$0xff]
        %v503 = vld [vmem:[#allocation2 + $0x48] sm:$0xff]
        %v504 = vld [vmem:[#allocation2 + $0x50] sm:$0xff]
        %v505 = vld [vmem:[#allocation2 + $0x58] sm:$0xff]
        %v506 = vld [vmem:[#allocation2 + $0x60] sm:$0xff]
        %v507 = vld [vmem:[#allocation2 + $0x68] sm:$0xff]
        %v508 = vld [vmem:[#allocation2 + $0x70] sm:$0xff]
        %v509 = vld [vmem:[#allocation2 + $0x78] sm:$0xff]
        %v510 = vld [vmem:[#allocation2 + $0x80] sm:$0xff]
        %v511 = vld [vmem:[#allocation2 + $0x88] sm:$0xff]
        %v512 = vld [vmem:[#allocation2 + $0x90] sm:$0xff]
        %v513 = vld [vmem:[#allocation2 + $0x98] sm:$0xff]
        %v514 = vld [vmem:[#allocation2 + $0xa0] sm:$0xff]
        %v515 = vld [vmem:[#allocation2 + $0xa8] sm:$0xff]
        %v516 = vld [vmem:[#allocation2 + $0xb0] sm:$0xff]
        %v517 = vld [vmem:[#allocation2 + $0xb8] sm:$0xff]
        %v518 = vld [vmem:[#allocation2 + $0xc0] sm:$0xff]
        %v519 = vld [vmem:[#allocation2 + $0xc8] sm:$0xff]
        %v520 = vld [vmem:[#allocation2 + $0xd0] sm:$0xff]
        %v521 = vld [vmem:[#allocation2 + $0xd8] sm:$0xff]
        %v522 = vld [vmem:[#allocation2 + $0xe0] sm:$0xff]
        %v523 = vld [vmem:[#allocation2 + $0xe8] sm:$0xff]
        %v524 = vld [vmem:[#allocation2 + $0xf0] sm:$0xff]
        %v525 = vld [vmem:[#allocation2 + $0xf8] sm:$0xff]
        %526 = vmatprep.subr.mxu0 0.0
        %527 = vmatpush1.xpose.msra.mxu0 %v509
        %528 = vmatprep.subr.mxu0 0.0
        %529 = vmatpush1.xpose.msra.mxu0 %v508
        %530 = vmatprep.subr.mxu0 0.0
        %531 = vmatpush1.xpose.msra.mxu0 %v507
        %532 = vmatprep.subr.mxu0 0.0
        %533 = vmatpush1.xpose.msra.mxu0 %v506
        %534 = vmatprep.subr.mxu0 0.0
        %535 = vmatpush1.xpose.msra.mxu0 %v505
        %536 = vmatprep.subr.mxu0 0.0
        %537 = vmatpush1.xpose.msra.mxu0 %v504
        %538 = vmatprep.subr.mxu0 0.0
        %539 = vmatpush1.xpose.msra.mxu0 %v503
        %540 = vmatprep.subr.mxu0 0.0
        %541 = vmatpush1.xpose.msra.mxu0 %v502
        %542 = vmatprep.subr.mxu0 0.0
        %543 = vmatpush1.xpose.msra.mxu0 %v501
        %544 = vmatprep.subr.mxu0 0.0
        %545 = vmatpush1.xpose.msra.mxu0 %v500
        %546 = vmatprep.subr.mxu0 0.0
        %547 = vmatpush1.xpose.msra.mxu0 %v499
        %548 = vmatprep.subr.mxu0 0.0
        %549 = vmatpush1.xpose.msra.mxu0 %v498
        %550 = vmatprep.subr.mxu0 0.0
        %551 = vmatpush1.xpose.msra.mxu0 %v497
        %552 = vmatprep.subr.mxu0 0.0
        %553 = vmatpush1.xpose.msra.mxu0 %v496
        %554 = vmatprep.subr.mxu0 0.0
        %555 = vmatpush1.xpose.msra.mxu0 %v495
        %556 = vmatprep.subr.mxu0 0.0
        %557 = vmatpush1.xpose.msra.mxu0 %v494
        %558 = vmatprep.subr.mxu0 0.0
        %559 = vmatpush2.xpose.msra.mxu0 %v525
        %560 = vmatprep.subr.mxu0 0.0
        %561 = vmatpush2.xpose.msra.mxu0 %v524
        %562 = vmatprep.subr.mxu0 0.0
        %563 = vmatpush2.xpose.msra.mxu0 %v523
        %564 = vmatprep.subr.mxu0 0.0
        %565 = vmatpush2.xpose.msra.mxu0 %v522
        %566 = vmatprep.subr.mxu0 0.0
        %567 = vmatpush2.xpose.msra.mxu0 %v521
        %568 = vmatprep.subr.mxu0 0.0
        %569 = vmatpush2.xpose.msra.mxu0 %v520
        %570 = vmatprep.subr.mxu0 0.0
        %571 = vmatpush2.xpose.msra.mxu0 %v519
        %572 = vmatprep.subr.mxu0 0.0
        %573 = vmatpush2.xpose.msra.mxu0 %v518
        %574 = vmatprep.subr.mxu0 0.0
        %575 = vmatpush2.xpose.msra.mxu0 %v517
        %576 = vmatprep.subr.mxu0 0.0
        %577 = vmatpush2.xpose.msra.mxu0 %v516
        %578 = vmatprep.subr.mxu0 0.0
        %579 = vmatpush2.xpose.msra.mxu0 %v515
        %580 = vmatprep.subr.mxu0 0.0
        %581 = vmatpush2.xpose.msra.mxu0 %v514
        %582 = vmatprep.subr.mxu0 0.0
        %583 = vmatpush2.xpose.msra.mxu0 %v513
        %584 = vmatprep.subr.mxu0 0.0
        %585 = vmatpush2.xpose.msra.mxu0 %v512
        %586 = vmatprep.subr.mxu0 0.0
        %587 = vmatpush2.xpose.msra.mxu0 %v511
        %588 = vmatprep.subr.mxu0 0.0
        %589 = vmatpush2.xpose.msra.mxu0 %v510
        %590 = vmatprep.mubr.f32.mxu0 0.0
        %591 = vmatmul.mubr.f32.gmra.mxu0 %v492
        %v592 = vpop.f32.mrf.mxu0
        %v593 = vadd.f32 0.0, %v592
        %v594 = vpop.f32.mrf.mxu0
        %v595 = vadd.f32 0.0, %v594
        %596 = vmatprep.mubr.f32.mxu0 0.0
        %597 = vmatmul.mubr.f32.gmra.mxu0 %v493
        %v598 = vpop.f32.mrf.mxu0
        %v599 = vadd.f32 0.0, %v598
        %v600 = vpop.f32.mrf.mxu0
        %v601 = vadd.f32 0.0, %v600
        %602 = vdwg.mxu0
        %603 = vst [vmem:[%s215] sm:$0xff] %v593
        %604 = vst [vmem:[%s215 + $0x8] sm:$0xff] %v595
        %605 = vst [vmem:[%s215 + $0x10] sm:$0xff] %v599
        %606 = vst [vmem:[%s215 + $0x18] sm:$0xff] %v601
        %s607 = sand.u32 %s96, 1
        %s608 = scalar_lea.sflag [#allocation5], %s607
        %s609 = sand.u32 %s96, 1
        %s610 = smul.addr %s609, 32
        %s611 = scalar_lea.vmem [#allocation8], %s610
        // Predicated region
        $region41: #{tpu_custom_call.1} parent=27 // pred_check
          %p612 = pneg %p106
        $region42: #{tpu_custom_call.1} parent=27 // pred_check_branch
          %614 = sbr.rel (%p612) target = $region44
        $region43: #{tpu_custom_call.1} parent=27 // pred_region
          %s615 = smul.u32 2, %s27
          %s616 = smul.u32 2, %s26
          %s618 = ssub.s32 512, 512
          %619 = vsyncadd %s608, %s618
          %s620 = smul.addr %s615, 4
          %s621 = sadd.s32 %s616, %s620
          %s622 = smul.addr %s621, 128
          %s623 = scalar_lea.hbm %s2, %s622
          %s624 = sshll.u32 %s611, 4
          %s625 = int_to_ptr.vmem [resolvable:$true] %s624
          %630 = dma.vmem_to_hbm [thread:$0]  %s625, 512, %s623, %s608, 256, 512, 16
        $region44: #{tpu_custom_call.1} parent=27 // pred_fallthru
          _
      $region28: #{tpu_custom_call.1} parent=5 // pred_fallthru
        _
      %p631 = scmp.le.s32.totalorder 2, %s17
      // Predicated region
      $region45: #{tpu_custom_call.1} parent=5 // pred_check
        %p632 = pneg %p631
      $region46: #{tpu_custom_call.1} parent=5 // pred_check_branch
        %634 = sbr.rel (%p632) target = $region48
      $region47: #{tpu_custom_call.1} parent=5 // pred_region
        %s635 = ssub.s32 %s17, 2
        // Predicated region
        $region49: #{tpu_custom_call.1} parent=47 // pred_check
          %p636 = pneg %p112
        $region50: #{tpu_custom_call.1} parent=47 // pred_check_branch
          %638 = sbr.rel (%p636) target = $region52
        $region51: #{tpu_custom_call.1} parent=47 // pred_region
          %s639 = sand.u32 %s97, 1
          %s640 = scalar_lea.sflag [#allocation5], %s639
          %s641 = sand.u32 %s97, 1
          %s642 = smul.addr %s641, 32
          %s643 = scalar_lea.vmem [#allocation8], %s642
          %644 = dma.done %s640, 512
        $region52: #{tpu_custom_call.1} parent=47 // pred_fallthru
          _
      $region48: #{tpu_custom_call.1} parent=5 // pred_fallthru
        _
    $region6: #{tpu_custom_call.1} parent=1 // loop_footer
      %s21 = sadd.s32 1, %s17
    $region7: #{tpu_custom_call.1} parent=1 // loop_footer_branch
      %16 = sbr.rel target = $region3
    $region8: #{tpu_custom_call.1} parent=1 // loop_exit
      _
    %645 = vsyncpa [#allocation4], 1
    %s646 = scalar_lea.sflag [#allocation4], 1
    %647 = vsyncpa %s646, 1
    %648 = vsyncpa [#allocation7], 1
    %s649 = scalar_lea.sflag [#allocation7], 1
    %650 = vsyncpa %s649, 1
    %651 = vsyncpa [#allocation5], 1
    %s652 = scalar_lea.sflag [#allocation5], 1
    %653 = vsyncpa %s652, 1

</llo_original>
